<compile_context>
chip_gen: v6e
topology: v6e:2x2x1
jax: 0.10.0
libtpu: 0.0.40
codegen_flags: <defaults>
</compile_context>

<pallas_src>
import functools
import numpy as np

import jax
import jax.numpy as jnp
from jax.experimental import pallas as pl
from jax.experimental.pallas import tpu as pltpu

DTYPE = jnp.float32       # activations / output / elementwise math
OP_DTYPE = jnp.bfloat16   # operator matrices + matmul inputs (MXU-native)


def _round_up(x, m):
    return ((x + m - 1) // m) * m


# ---------------------------------------------------------------------------
# Host-side (trace-time) operator matrices — constant-folded by XLA.
# ---------------------------------------------------------------------------
def _bicubic_matrix(in_size, out_size):
    """PyTorch bicubic interpolation (align_corners=False, a=-0.75) as (out,in)."""
    A = -0.75
    M = np.zeros((out_size, in_size), dtype=np.float64)
    for i in range(out_size):
        src = (i + 0.5) * in_size / out_size - 0.5
        x0 = int(np.floor(src))
        t = src - x0
        c = [
            ((A * (t + 1.0) - 5.0 * A) * (t + 1.0) + 8.0 * A) * (t + 1.0) - 4.0 * A,
            ((A + 2.0) * t - (A + 3.0)) * t * t + 1.0,
            ((A + 2.0) * (1.0 - t) - (A + 3.0)) * (1.0 - t) * (1.0 - t) + 1.0,
            ((A * (2.0 - t) - 5.0 * A) * (2.0 - t) + 8.0 * A) * (2.0 - t) - 4.0 * A,
        ]
        for j in range(4):
            idx = min(max(x0 - 1 + j, 0), in_size - 1)
            M[i, idx] += c[j]
    return M


def _gaussian_matrix(n, ksize=5, sigma=1.5):
    """torchvision GaussianBlur 1-D pass (reflect padding) as an (n, n) matrix."""
    half = (ksize - 1) * 0.5
    xs = np.linspace(-half, half, ksize)
    pdf = np.exp(-0.5 * (xs / sigma) ** 2)
    k1d = pdf / pdf.sum()
    r = ksize // 2
    G = np.zeros((n, n), dtype=np.float64)
    for i in range(n):
        for j in range(ksize):
            idx = i + j - r
            if idx < 0:                       # 'reflect' (edge pixel not repeated)
                idx = -idx
            elif idx >= n:
                idx = 2 * (n - 1) - idx
            G[i, idx] += k1d[j]
    return G


def _operator_matrices(H, W, scale):
    """Returns (Rh, Rw, Gh, Gw): bicubic down->up and gaussian-blur 1-D operators."""
    Hd, Wd = H // scale, W // scale
    Rh = _bicubic_matrix(Hd, H) @ _bicubic_matrix(H, Hd)   # (H, H): up after down
    Rw = _bicubic_matrix(Wd, W) @ _bicubic_matrix(W, Wd)   # (W, W)
    Gh = _gaussian_matrix(H)
    Gw = _gaussian_matrix(W)
    return Rh, Rw, Gh, Gw


# ---------------------------------------------------------------------------
# Fused Pallas kernel
# ---------------------------------------------------------------------------
def _decompose_kernel(x_ref, k_ref, o_ref):
    # x_ref : (tm, HW)      f32  flattened images (lanes = HW)
    # k_ref : (HW, 2*tn)    bf16 [kdu columns of block j | kbl columns of block j]
    # o_ref : (tm, tn)      f32  output column block j
    tn = o_ref.shape[1]
    j = pl.program_id(1)
    col0 = j * tn
    if tn % 128 == 0:
        col0 = pl.multiple_of(col0, 128)

    x = x_ref[...]                                              # (tm, HW) f32
    # ONE fused MXU matmul producing both down-up and blur column blocks.
    r = jnp.dot(x.astype(OP_DTYPE), k_ref[...],
                preferred_element_type=jnp.float32)             # (tm, 2*tn) f32
    du = r[:, :tn]                                              # x_down_up cols j
    bl = r[:, tn:]                                              # gaussian blur cols j

    xs = x_ref[:, pl.ds(col0, tn)]                              # (tm, tn) f32
    g = jnp.abs(xs - bl)                                        # gaussain_f
    # gauss + relu(cross - gauss), minimal live temporaries.
    o_ref[...] = (g + jnp.maximum(jnp.abs(xs - du) - g, 0.0)).astype(o_ref.dtype)


@functools.partial(jax.jit, static_argnames=("scale",))
def decompose_forward(x, scale=2):
    """x: (B, C, H, W) float32 -> (B, C, H, W)."""
    B, C, H, W = x.shape
    HW = H * W
    M = B * C

    # Trace-time constant operators (numpy, folded by XLA).
    Rh, Rw, Gh, Gw = _operator_matrices(H, W, scale)
    # Row-major Kronecker:  vec(Rh @ X @ Rw^T) = (Rh (x) Rw) @ vec(X),
    # transposed so the kernel right-multiplies:  out = x_flat @ K^T.
    kdu_t = np.kron(Rh, Rw).T                                   # (HW, HW)
    kbl_t = np.kron(Gh, Gw).T                                   # (HW, HW)

    # Row tiling: big blocks amortize the per-grid-step pipeline overhead.
    tm = min(1024, _round_up(M, 8))
    m_blocks = pl.cdiv(M, tm)           # ragged last block handled by Pallas

    # If there is only one row block, split the output columns into a second
    # "parallel" grid axis so v7x's two TensorCores both get work.
    n_split = 2 if (m_blocks == 1 and HW % 256 == 0) else 1
    tn = HW // n_split

    # Fused operator, arranged per output-column block j as [kdu_j | kbl_j].
    kblocks = []
    for jj in range(n_split):
        sl = slice(jj * tn, (jj + 1) * tn)
        kblocks.append(kdu_t[:, sl])
        kblocks.append(kbl_t[:, sl])
    k_fused = jnp.asarray(np.concatenate(kblocks, axis=1), OP_DTYPE)   # (HW, 2*HW)

    x_flat = x.reshape(M, HW).astype(DTYPE)

    out = pl.pallas_call(
        _decompose_kernel,
        out_shape=jax.ShapeDtypeStruct((M, HW), DTYPE),
        grid_spec=pltpu.PrefetchScalarGridSpec(
            num_scalar_prefetch=0,
            grid=(m_blocks, n_split),
            in_specs=[
                # Full image rows (same block for every j -> fetched once per i).
                pl.BlockSpec((tm, HW), lambda i, j: (i, 0)),
                # Fused operator column block (constant across i).
                pl.BlockSpec((HW, 2 * tn), lambda i, j: (0, j)),
            ],
            out_specs=pl.BlockSpec((tm, tn), lambda i, j: (i, j)),
        ),
        compiler_params=pltpu.CompilerParams(
            dimension_semantics=("parallel", "parallel"),
            vmem_limit_bytes=32 * 1024 * 1024,
        ),
    )(x_flat, k_fused)

    return out.reshape(B, C, H, W)


# ---------------------------------------------------------------------------
# Pure-numpy reference (exact math, separable form) for a sanity check.
# ---------------------------------------------------------------------------
def _reference(x_np, scale):
    B, C, H, W = x_np.shape
    Rh, Rw, Gh, Gw = _operator_matrices(H, W, scale)
    xf = x_np.astype(np.float64)
    du = np.einsum("hk,bckv,wv->bchw", Rh, xf, Rw)
    bl = np.einsum("hk,bckv,wv->bchw", Gh, xf, Gw)
    g = np.abs(xf - bl)
    c = np.abs(xf - du)
    c = np.maximum(c - g, 0.0)
    return (g + c).astype(np.float32)


# ---------------------------------------------------------------------------
if __name__ == "__main__":
    B, C, H, W = 2, 4, 16, 16
    scale = 2

    x = jax.random.normal(jax.random.PRNGKey(0), (B, C, H, W), DTYPE)

    out = decompose_forward(x, scale=scale)
    jax.block_until_ready(out)

    assert out.shape == (B, C, H, W), out.shape
    assert bool(jnp.all(jnp.isfinite(out)))

    ref = _reference(np.asarray(x), scale)
    max_err = float(jnp.max(jnp.abs(out - jnp.asarray(ref))))
    # Error budget is dominated by the bf16 operator / matmul-input cast.
    assert max_err < 7.5e-2, f"max abs error vs reference: {max_err}"

    print("KERNEL_OK")
</pallas_src>

<mosaic_0001>
module attributes {stable_mosaic.version = 11 : i64} {
  func.func @_decompose_kernel(%arg0: i32, %arg1: i32, %arg2: memref<8x256xf32, #tpu.memory_space<vmem>>, %arg3: memref<256x256xbf16, #tpu.memory_space<vmem>>, %arg4: memref<8x128xf32, #tpu.memory_space<vmem>>) attributes {dimension_semantics = [#tpu.dimension_semantics<parallel>, #tpu.dimension_semantics<parallel>], iteration_bounds = array<i64: 1, 2>, scalar_prefetch = 0 : i64, scratch_operands = 0 : i64, tpu.core_type = #tpu.core_type<tc>, window_params = [{transform_indices = @transform_0, window_bounds = array<i64: 8, 256>}, {transform_indices = @transform_1, window_bounds = array<i64: 256, 256>}, {transform_indices = @transform_2, window_bounds = array<i64: 8, 128>}]} {
    %c128_i32 = arith.constant 128 : i32
    %0 = arith.muli %arg1, %c128_i32 : i32
    %1 = tpu.assume_multiple %0, 128 : i32
    %c0 = arith.constant 0 : index
    %c0_0 = arith.constant 0 : index
    %2 = vector.load %arg2[%c0, %c0_0] : memref<8x256xf32, #tpu.memory_space<vmem>>, vector<8x256xf32>
    %3 = arith.truncf %2 : vector<8x256xf32> to vector<8x256xbf16>
    %c0_1 = arith.constant 0 : index
    %c0_2 = arith.constant 0 : index
    %4 = vector.load %arg3[%c0_1, %c0_2] : memref<256x256xbf16, #tpu.memory_space<vmem>>, vector<256x256xbf16>
    %cst = arith.constant dense<0.000000e+00> : vector<8x256xf32>
    %5 = tpu.matmul %3, %4, %cst {dimension_numbers = #tpu.dot_dimension_numbers<[1], [0], [0], [1], [0, 0, 1, 1], [], []>} : vector<8x256xbf16>, vector<256x256xbf16>, vector<8x256xf32> -> vector<8x256xf32>
    %6 = vector.extract_strided_slice %5 {offsets = [0, 0], sizes = [8, 128], strides = [1, 1]} : vector<8x256xf32> to vector<8x128xf32>
    %7 = vector.extract_strided_slice %5 {offsets = [0, 128], sizes = [8, 128], strides = [1, 1]} : vector<8x256xf32> to vector<8x128xf32>
    %c0_3 = arith.constant 0 : index
    %8 = arith.index_cast %1 : i32 to index
    %9 = vector.load %arg2[%c0_3, %8] : memref<8x256xf32, #tpu.memory_space<vmem>>, vector<8x128xf32>
    %10 = arith.subf %9, %7 : vector<8x128xf32>
    %11 = math.absf %10 : vector<8x128xf32>
    %12 = arith.subf %9, %6 : vector<8x128xf32>
    %13 = math.absf %12 : vector<8x128xf32>
    %14 = arith.subf %13, %11 : vector<8x128xf32>
    %cst_4 = arith.constant 0.000000e+00 : f32
    %15 = vector.broadcast %cst_4 : f32 to vector<8x128xf32>
    %16 = arith.maximumf %14, %15 : vector<8x128xf32>
    %17 = arith.addf %11, %16 : vector<8x128xf32>
    %c0_5 = arith.constant 0 : index
    %c0_6 = arith.constant 0 : index
    %18 = vector.load %arg4[%c0_5, %c0_6] : memref<8x128xf32, #tpu.memory_space<vmem>>, vector<8x128xf32>
    tpu.vector_store %arg4[%c0_5, %c0_6], %17 {strides = array<i32>} : memref<8x128xf32, #tpu.memory_space<vmem>>, vector<8x128xf32>,
    return
  }
  func.func @transform_0(%arg0: i32, %arg1: i32) -> (i32, i32) {
    %c0_i32 = arith.constant 0 : i32
    %c0_i32_0 = arith.constant 0 : i32
    return %arg0, %c0_i32 : i32, i32
  }
  func.func @transform_1(%arg0: i32, %arg1: i32) -> (i32, i32) {
    %c0_i32 = arith.constant 0 : i32
    %c0_i32_0 = arith.constant 0 : i32
    return %c0_i32, %arg1 : i32, i32
  }
  func.func @transform_2(%arg0: i32, %arg1: i32) -> (i32, i32) {
    %c0_i32 = arith.constant 0 : i32
    return %arg0, %arg1 : i32, i32
  }
}

</mosaic_0001>

<llo_original>
// kernel: decompose_forward.1
$region0: #{decompose_forward.1}
  #allocation0 [shape = 'u32[]', space=smem, size = 0x4, offset = 0x4, fixed_abs, tag = 'smem constant byte address 0x4 - core index']
  #allocation1 [shape = 'u32[144,128]{1,0:T(1,128)}', space=vmem, size = 0x12000, scoped, tag = 'internal scratch']
  %s0 = inlined_call_operand.vmem [shape: f32[8,256], index: 0, kind: input, shape index: {}]
  %s1 = inlined_call_operand.hbm [shape: bf16[256,512], index: 1, kind: input, shape index: {}]
  %s2 = inlined_call_operand.vmem [shape: f32[8,256], index: 2, kind: output, shape index: {}]
  %s3 = sld [smem:[#allocation0]]
  $region45: #{decompose_forward.1} parent=0
    _
  %s5 = ssub.s32 1, %s3
  %s6 = scalar_select 0, %s5, %s3
  $region1: #{decompose_forward.1} parent=0
    #allocation2 [shape = 'u8[262144]{0}', space=vmem, size = 0x40000, scoped, tag = 'input window, operand 1']
    #allocation3 [shape = 's32[2]{0}', space=sflag, size = 0x8, scoped, tag = 'scoped memory for decompose_forward.1']
    %7 = vsyncpa [#allocation3], 0
    %s8 = scalar_lea.sflag [#allocation3], 1
    %9 = vsyncpa %s8, 0
    loop: start=0, step=1, limit=4
    $region2: #{decompose_forward.1} parent=1 // loop_pre_header
      _
    $region3: #{decompose_forward.1} parent=1 // loop_header
      %s11 = sphi 0, %s15
      %p12 = scmp.ge.s32.totalorder %s11, 4
      %s18 = sphi 0, %s30
      %s19 = sphi 0, %s26
      %s20 = sphi 0, %s18
      %s21 = sphi 0, %s19
      %s22 = sphi 0, %s20
      %s23 = sphi 0, %s21
      %s33 = sphi 0, %s35
      %s36 = sphi 0, %s33
      %s37 = sphi 0, %s36
      %s53 = sphi 0, %s37
      %s59 = sphi 0, %s61
      %s62 = sphi 0, %s59
      %s63 = sphi 0, %s62
      %s79 = sphi 0, %s63
      %s87 = sphi 0, %s89
      %s90 = sphi 0, %s87
      %s91 = sphi 0, %s90
      %s107 = sphi 0, %s91
    $region4: #{decompose_forward.1} parent=1 // loop_header_branch
      %14 = sbr.rel (%p12) target = $region8
    $region5: #{decompose_forward.1} parent=1 // loop_body
      %s16 = ssub.s32 %s11, 1
      %s17 = ssub.s32 %s11, 2
      %s24 = sadd.s32 1, %s19
      %p25 = scmp.ge.s32.totalorder %s24, 2
      %s26 = scalar_select %p25, 0, %s24
      %s27 = sadd.s32 1, %s18
      %s28 = scalar_select %p25, %s27, %s18
      %p29 = scmp.ge.s32.totalorder %s28, 1
      %s30 = scalar_select %p29, 0, %s28
      %s31 = ssub.s32 %s18, %s30
      %p32 = scmp.eq.s32.totalorder %s31, 0
      %s34 = sadd.s32 %s33, 1
      %s35 = scalar_select %p32, %s33, %s34
      %p38 = pneg %p32
      %p39 = scmp.eq.s32.totalorder %s11, 1
      %p40 = por %p38, %p39
      %p41 = scmp.ne.s32.totalorder %s33, %s36
      %p42 = scmp.eq.s32.totalorder %s11, 0
      %p43 = por %p41, %p42
      %p44 = scmp.ne.s32.totalorder %s33, %s36
      %p45 = scmp.eq.s32.totalorder %s16, 1
      %p46 = por %p44, %p45
      %p47 = scmp.ne.s32.totalorder %s36, %s37
      %p48 = scmp.eq.s32.totalorder %s16, 0
      %p49 = por %p47, %p48
      %p50 = scmp.ne.s32.totalorder %s36, %s37
      %p51 = scmp.eq.s32.totalorder %s17, 1
      %p52 = por %p50, %p51
      %p54 = scmp.ne.s32.totalorder %s37, %s53
      %p55 = scmp.eq.s32.totalorder %s17, 0
      %p56 = por %p54, %p55
      %s57 = ssub.s32 %s19, %s26
      %p58 = scmp.eq.s32.totalorder %s57, 0
      %s60 = sadd.s32 %s59, 1
      %s61 = scalar_select %p58, %s59, %s60
      %p64 = pneg %p58
      %p65 = scmp.eq.s32.totalorder %s11, 1
      %p66 = por %p64, %p65
      %p67 = scmp.ne.s32.totalorder %s59, %s62
      %p68 = scmp.eq.s32.totalorder %s11, 0
      %p69 = por %p67, %p68
      %p70 = scmp.ne.s32.totalorder %s59, %s62
      %p71 = scmp.eq.s32.totalorder %s16, 1
      %p72 = por %p70, %p71
      %p73 = scmp.ne.s32.totalorder %s62, %s63
      %p74 = scmp.eq.s32.totalorder %s16, 0
      %p75 = por %p73, %p74
      %p76 = scmp.ne.s32.totalorder %s62, %s63
      %p77 = scmp.eq.s32.totalorder %s17, 1
      %p78 = por %p76, %p77
      %p80 = scmp.ne.s32.totalorder %s63, %s79
      %p81 = scmp.eq.s32.totalorder %s17, 0
      %p82 = por %p80, %p81
      %s83 = ssub.s32 %s18, %s30
      %s84 = ssub.s32 %s19, %s26
      %s85 = sor.u32 %s83, %s84
      %p86 = scmp.eq.s32.totalorder %s85, 0
      %s88 = sadd.s32 %s87, 1
      %s89 = scalar_select %p86, %s87, %s88
      %p92 = pneg %p86
      %p93 = scmp.eq.s32.totalorder %s11, 1
      %p94 = por %p92, %p93
      %p95 = scmp.ne.s32.totalorder %s87, %s90
      %p96 = scmp.eq.s32.totalorder %s11, 0
      %p97 = por %p95, %p96
      %p98 = scmp.ne.s32.totalorder %s87, %s90
      %p99 = scmp.eq.s32.totalorder %s16, 1
      %p100 = por %p98, %p99
      %p101 = scmp.ne.s32.totalorder %s90, %s91
      %p102 = scmp.eq.s32.totalorder %s16, 0
      %p103 = por %p101, %p102
      %p104 = scmp.ne.s32.totalorder %s90, %s91
      %p105 = scmp.eq.s32.totalorder %s17, 1
      %p106 = por %p104, %p105
      %p108 = scmp.ne.s32.totalorder %s91, %s107
      %p109 = scmp.eq.s32.totalorder %s17, 0
      %p110 = por %p108, %p109
      %p111 = scmp.le.s32.totalorder 1, %s11
      %p112 = scmp.lt.s32.totalorder %s11, 3
      %p113 = pnand %p111, %p112
      %p114 = pneg %p113
      // Predicated region
      $region9: #{decompose_forward.1} parent=5 // pred_check
        _
      $region10: #{decompose_forward.1} parent=5 // pred_check_branch
        %116 = sbr.rel (%p113) target = $region12
      $region11: #{decompose_forward.1} parent=5 // pred_region
        %s117 = ssub.s32 %s11, 1
        // Predicated region
        $region13: #{decompose_forward.1} parent=11 // pred_check
          %p118 = pneg %p49
        $region14: #{decompose_forward.1} parent=11 // pred_check_branch
          %120 = sbr.rel (%p118) target = $region16
        $region15: #{decompose_forward.1} parent=11 // pred_region
          %p121 = scmp.lt.s32.totalorder %s20, 0
          %s122 = scalar_select %p121, %s20, 0
          %s123 = smul.addr %s122, 2
          %s124 = smul.addr %s123, 8
          %s125 = scalar_lea.vmem %s0, %s124
        $region16: #{decompose_forward.1} parent=11 // pred_fallthru
          _
      $region12: #{decompose_forward.1} parent=5 // pred_fallthru
        _
      %p126 = scmp.lt.s32.totalorder %s11, 2
      // Predicated region
      $region17: #{decompose_forward.1} parent=5 // pred_check
        %p127 = pneg %p126
      $region18: #{decompose_forward.1} parent=5 // pred_check_branch
        %129 = sbr.rel (%p127) target = $region20
      $region19: #{decompose_forward.1} parent=5 // pred_region
        // Predicated region
        $region21: #{decompose_forward.1} parent=19 // pred_check
          %p130 = pneg %p69
        $region22: #{decompose_forward.1} parent=19 // pred_check_branch
          %132 = sbr.rel (%p130) target = $region24
        $region23: #{decompose_forward.1} parent=19 // pred_region
          %s133 = sand.u32 %s59, 1
          %s134 = scalar_lea.sflag [#allocation3], %s133
          %s135 = sand.u32 %s59, 1
          %s136 = smul.addr %s135, 256
          %s137 = scalar_lea.vmem [#allocation2], %s136
          %s138 = smul.u32 2, %s19
          %s140 = ssub.s32 4096, 4096
          %141 = vsyncadd %s134, %s140
          %s142 = smul.addr %s138, 64
          %s143 = scalar_lea.hbm %s1, %s142
          %s144 = sshll.u32 %s137, 4
          %s145 = int_to_ptr.vmem [resolvable:$true] %s144
          %150 = dma.hbm_to_vmem [thread:$0]  %s143, 4096, %s145, %s134, 256, 128, 8
        $region24: #{decompose_forward.1} parent=19 // pred_fallthru
          _
      $region20: #{decompose_forward.1} parent=5 // pred_fallthru
        _
      %p151 = scmp.le.s32.totalorder 1, %s11
      %p152 = scmp.lt.s32.totalorder %s11, 3
      %p153 = pnand %p151, %p152
      %p154 = pneg %p153
      // Predicated region
      $region25: #{decompose_forward.1} parent=5 // pred_check
        _
      $region26: #{decompose_forward.1} parent=5 // pred_check_branch
        %156 = sbr.rel (%p153) target = $region28
      $region27: #{decompose_forward.1} parent=5 // pred_region
        %s157 = ssub.s32 %s11, 1
        %s158 = sand.u32 %s62, 1
        %s159 = scalar_lea.sflag [#allocation3], %s158
        %s160 = sand.u32 %s62, 1
        %s161 = smul.addr %s160, 256
        %s162 = scalar_lea.vmem [#allocation2], %s161
        // Predicated region
        $region29: #{decompose_forward.1} parent=27 // pred_check
          %p163 = pneg %p75
        $region30: #{decompose_forward.1} parent=27 // pred_check_branch
          %165 = sbr.rel (%p163) target = $region32
        $region31: #{decompose_forward.1} parent=27 // pred_region
          %166 = dma.done %s159, 4096
        $region32: #{decompose_forward.1} parent=27 // pred_fallthru
          _
        %p167 = scmp.lt.s32.totalorder %s20, 0
        %s168 = scalar_select %p167, %s20, 0
        %s169 = smul.addr %s168, 2
        %s170 = smul.addr %s169, 8
        %s171 = scalar_lea.vmem %s0, %s170
        %p172 = pneg %p49
        %p173 = pneg %p46
        %s174 = sand.u32 %s62, 1
        %s175 = scalar_lea.sflag [#allocation3], %s174
        %s176 = sand.u32 %s62, 1
        %s177 = smul.addr %s176, 256
        %s178 = scalar_lea.vmem [#allocation2], %s177
        %p179 = pneg %p75
        %p180 = pneg %p72
        %p181 = pneg %p103
        %p182 = pneg %p100
        %p183 = scmp.lt.s32.totalorder %s20, 0
        %s184 = scalar_select %p183, %s20, 0
        %p185 = scmp.lt.s32.totalorder %s21, 1
        %s186 = scalar_select %p185, %s21, 1
        %s187 = smul.addr %s184, 2
        %s188 = sadd.s32 %s186, %s187
        %s189 = smul.addr %s188, 8
        %s190 = scalar_lea.vmem %s2, %s189
        %p191 = scmp.lt.s32.totalorder %s20, 0
        %s192 = scalar_select %p191, %s20, 0
        %s193 = smul.addr %s192, 2
        %s194 = smul.addr %s193, 8
        %s195 = scalar_lea.vmem %s0, %s194
        %s196 = smul.u32 2, %s21
        %p197 = scmp.lt.s32.totalorder %s20, 0
        %s198 = scalar_select %p197, %s20, 0
        %p199 = scmp.lt.s32.totalorder %s21, 1
        %s200 = scalar_select %p199, %s21, 1
        %s201 = smul.addr %s198, 2
        %s202 = sadd.s32 %s200, %s201
        %s203 = smul.addr %s202, 8
        %s204 = scalar_lea.vmem %s2, %s203
        %s205 = smul.u32 %s21, 128
        %v206 = vld [vmem:[%s195] sm:$0xff]
        %v207 = vld [vmem:[%s195 + $0x8] sm:$0xff]
        %v208 = vpack.c.bf16 %v206, %v206
        %v209 = vpack.c.bf16 %v207, %v207
        %v210 = vld [vmem:[%s162] sm:$0xff]
        %v211 = vld [vmem:[%s162 + $0x8] sm:$0xff]
        %v212 = vld [vmem:[%s162 + $0x10] sm:$0xff]
        %v213 = vld [vmem:[%s162 + $0x18] sm:$0xff]
        %v214 = vld [vmem:[%s162 + $0x20] sm:$0xff]
        %v215 = vld [vmem:[%s162 + $0x28] sm:$0xff]
        %v216 = vld [vmem:[%s162 + $0x30] sm:$0xff]
        %v217 = vld [vmem:[%s162 + $0x38] sm:$0xff]
        %v218 = vld [vmem:[%s162 + $0x40] sm:$0xff]
        %v219 = vld [vmem:[%s162 + $0x48] sm:$0xff]
        %v220 = vld [vmem:[%s162 + $0x50] sm:$0xff]
        %v221 = vld [vmem:[%s162 + $0x58] sm:$0xff]
        %v222 = vld [vmem:[%s162 + $0x60] sm:$0xff]
        %v223 = vld [vmem:[%s162 + $0x68] sm:$0xff]
        %v224 = vld [vmem:[%s162 + $0x70] sm:$0xff]
        %v225 = vld [vmem:[%s162 + $0x78] sm:$0xff]
        %v226 = vld [vmem:[%s162 + $0x80] sm:$0xff]
        %v227 = vld [vmem:[%s162 + $0x88] sm:$0xff]
        %v228 = vld [vmem:[%s162 + $0x90] sm:$0xff]
        %v229 = vld [vmem:[%s162 + $0x98] sm:$0xff]
        %v230 = vld [vmem:[%s162 + $0xa0] sm:$0xff]
        %v231 = vld [vmem:[%s162 + $0xa8] sm:$0xff]
        %v232 = vld [vmem:[%s162 + $0xb0] sm:$0xff]
        %v233 = vld [vmem:[%s162 + $0xb8] sm:$0xff]
        %v234 = vld [vmem:[%s162 + $0xc0] sm:$0xff]
        %v235 = vld [vmem:[%s162 + $0xc8] sm:$0xff]
        %v236 = vld [vmem:[%s162 + $0xd0] sm:$0xff]
        %v237 = vld [vmem:[%s162 + $0xd8] sm:$0xff]
        %v238 = vld [vmem:[%s162 + $0xe0] sm:$0xff]
        %v239 = vld [vmem:[%s162 + $0xe8] sm:$0xff]
        %v240 = vld [vmem:[%s162 + $0xf0] sm:$0xff]
        %v241 = vld [vmem:[%s162 + $0xf8] sm:$0xff]
        %v274 = vunpack.c.l.b16 %v210
        %v275 = vunpack.c.h.b16 %v210
        %v276 = vunpack.c.l.b16 %v211
        %v277 = vunpack.c.h.b16 %v211
        %v278 = vunpack.c.l.b16 %v212
        %v279 = vunpack.c.h.b16 %v212
        %v280 = vunpack.c.l.b16 %v213
        %v281 = vunpack.c.h.b16 %v213
        %v282 = vunpack.c.l.b16 %v214
        %v283 = vunpack.c.h.b16 %v214
        %v284 = vunpack.c.l.b16 %v215
        %v285 = vunpack.c.h.b16 %v215
        %v286 = vunpack.c.l.b16 %v216
        %v287 = vunpack.c.h.b16 %v216
        %v288 = vunpack.c.l.b16 %v217
        %v289 = vunpack.c.h.b16 %v217
        %v290 = vunpack.c.l.b16 %v218
        %v291 = vunpack.c.h.b16 %v218
        %v292 = vunpack.c.l.b16 %v219
        %v293 = vunpack.c.h.b16 %v219
        %v294 = vunpack.c.l.b16 %v220
        %v295 = vunpack.c.h.b16 %v220
        %v296 = vunpack.c.l.b16 %v221
        %v297 = vunpack.c.h.b16 %v221
        %v298 = vunpack.c.l.b16 %v222
        %v299 = vunpack.c.h.b16 %v222
        %v300 = vunpack.c.l.b16 %v223
        %v301 = vunpack.c.h.b16 %v223
        %v302 = vunpack.c.l.b16 %v224
        %v303 = vunpack.c.h.b16 %v224
        %v304 = vunpack.c.l.b16 %v225
        %v305 = vunpack.c.h.b16 %v225
        %v306 = vunpack.c.l.b16 %v226
        %v307 = vunpack.c.h.b16 %v226
        %v308 = vunpack.c.l.b16 %v227
        %v309 = vunpack.c.h.b16 %v227
        %v310 = vunpack.c.l.b16 %v228
        %v311 = vunpack.c.h.b16 %v228
        %v312 = vunpack.c.l.b16 %v229
        %v313 = vunpack.c.h.b16 %v229
        %v314 = vunpack.c.l.b16 %v230
        %v315 = vunpack.c.h.b16 %v230
        %v316 = vunpack.c.l.b16 %v231
        %v317 = vunpack.c.h.b16 %v231
        %v318 = vunpack.c.l.b16 %v232
        %v319 = vunpack.c.h.b16 %v232
        %v320 = vunpack.c.l.b16 %v233
        %v321 = vunpack.c.h.b16 %v233
        %v322 = vunpack.c.l.b16 %v234
        %v323 = vunpack.c.h.b16 %v234
        %v324 = vunpack.c.l.b16 %v235
        %v325 = vunpack.c.h.b16 %v235
        %v326 = vunpack.c.l.b16 %v236
        %v327 = vunpack.c.h.b16 %v236
        %v328 = vunpack.c.l.b16 %v237
        %v329 = vunpack.c.h.b16 %v237
        %v330 = vunpack.c.l.b16 %v238
        %v331 = vunpack.c.h.b16 %v238
        %v332 = vunpack.c.l.b16 %v239
        %v333 = vunpack.c.h.b16 %v239
        %v334 = vunpack.c.l.b16 %v240
        %v335 = vunpack.c.h.b16 %v240
        %v336 = vunpack.c.l.b16 %v241
        %v337 = vunpack.c.h.b16 %v241
        %v338 = vpack.c.b16 %v276, %v274
        %v339 = vpack.c.b16 %v277, %v275
        %v340 = vpack.c.b16 %v280, %v278
        %v341 = vpack.c.b16 %v281, %v279
        %v342 = vpack.c.b16 %v284, %v282
        %v343 = vpack.c.b16 %v285, %v283
        %v344 = vpack.c.b16 %v288, %v286
        %v345 = vpack.c.b16 %v289, %v287
        %v346 = vpack.c.b16 %v292, %v290
        %v347 = vpack.c.b16 %v293, %v291
        %v348 = vpack.c.b16 %v296, %v294
        %v349 = vpack.c.b16 %v297, %v295
        %v350 = vpack.c.b16 %v300, %v298
        %v351 = vpack.c.b16 %v301, %v299
        %v352 = vpack.c.b16 %v304, %v302
        %v353 = vpack.c.b16 %v305, %v303
        %v354 = vpack.c.b16 %v308, %v306
        %v355 = vpack.c.b16 %v309, %v307
        %v356 = vpack.c.b16 %v312, %v310
        %v357 = vpack.c.b16 %v313, %v311
        %v358 = vpack.c.b16 %v316, %v314
        %v359 = vpack.c.b16 %v317, %v315
        %v360 = vpack.c.b16 %v320, %v318
        %v361 = vpack.c.b16 %v321, %v319
        %v362 = vpack.c.b16 %v324, %v322
        %v363 = vpack.c.b16 %v325, %v323
        %v364 = vpack.c.b16 %v328, %v326
        %v365 = vpack.c.b16 %v329, %v327
        %v366 = vpack.c.b16 %v332, %v330
        %v367 = vpack.c.b16 %v333, %v331
        %v368 = vpack.c.b16 %v336, %v334
        %v369 = vpack.c.b16 %v337, %v335
        %402 = vmatprep.subr.bf16.mxu0 %v353
        %403 = vmatpush1.bf16.msra.mxu0 %v352
        %404 = vmatprep.subr.bf16.mxu0 %v351
        %405 = vmatpush1.bf16.msra.mxu0 %v350
        %406 = vmatprep.subr.bf16.mxu0 %v349
        %407 = vmatpush1.bf16.msra.mxu0 %v348
        %408 = vmatprep.subr.bf16.mxu0 %v347
        %409 = vmatpush1.bf16.msra.mxu0 %v346
        %410 = vmatprep.subr.bf16.mxu0 %v345
        %411 = vmatpush1.bf16.msra.mxu0 %v344
        %412 = vmatprep.subr.bf16.mxu0 %v343
        %413 = vmatpush1.bf16.msra.mxu0 %v342
        %414 = vmatprep.subr.bf16.mxu0 %v341
        %415 = vmatpush1.bf16.msra.mxu0 %v340
        %416 = vmatprep.subr.bf16.mxu0 %v339
        %417 = vmatpush1.bf16.msra.mxu0 %v338
        %418 = vmatprep.subr.bf16.mxu0 %v369
        %419 = vmatpush2.bf16.msra.mxu0 %v368
        %420 = vmatprep.subr.bf16.mxu0 %v367
        %421 = vmatpush2.bf16.msra.mxu0 %v366
        %422 = vmatprep.subr.bf16.mxu0 %v365
        %423 = vmatpush2.bf16.msra.mxu0 %v364
        %424 = vmatprep.subr.bf16.mxu0 %v363
        %425 = vmatpush2.bf16.msra.mxu0 %v362
        %426 = vmatprep.subr.bf16.mxu0 %v361
        %427 = vmatpush2.bf16.msra.mxu0 %v360
        %428 = vmatprep.subr.bf16.mxu0 %v359
        %429 = vmatpush2.bf16.msra.mxu0 %v358
        %430 = vmatprep.subr.bf16.mxu0 %v357
        %431 = vmatpush2.bf16.msra.mxu0 %v356
        %432 = vmatprep.subr.bf16.mxu0 %v355
        %433 = vmatpush2.bf16.msra.mxu0 %v354
        %434 = vmatprep.mubr.bf16.mxu0 %v209
        %435 = vmatmul.mubr.bf16.gmra.mxu0 %v208
        %v436 = vpop.f32.mrf.mxu0
        %v437 = vadd.f32 0.0, %v436
        %v438 = vpop.f32.mrf.mxu0
        %v439 = vadd.f32 0.0, %v438
        %v440 = vpop.f32.mrf.mxu0
        %v441 = vpop.f32.mrf.mxu0
        %442 = vdwg.mxu0
        %s443 = sshra.s32 %s205, 7
        %s444 = sand.u32 %s205, 127
        %s445 = smul.addr %s443, 8
        %s446 = scalar_lea.vmem %s195, %s445
        %v447 = vld [vmem:[%s446] sm:$0xff]
        %v448 = vsub.f32 %v447, %v439
        %v449 = vand.u32 2147483647, %v448
        %v450 = vsub.f32 %v447, %v437
        %v451 = vand.u32 2147483647, %v450
        %v452 = vsub.f32 %v451, %v449
        %v453 = vmax.f32 %v452, 0.0
        %v454 = vadd.f32 %v449, %v453
        %455 = vst [vmem:[%s204] sm:$0xff] %v454
        %p456 = scmp.lt.s32.totalorder %s20, 0
        %s457 = scalar_select %p456, %s20, 0
        %p458 = scmp.lt.s32.totalorder %s21, 1
        %s459 = scalar_select %p458, %s21, 1
        %s460 = smul.addr %s457, 2
        %s461 = sadd.s32 %s459, %s460
        %s462 = smul.addr %s461, 8
        %s463 = scalar_lea.vmem %s2, %s462
        // Predicated region
        $region33: #{decompose_forward.1} parent=27 // pred_check
          %p464 = pneg %p100
        $region34: #{decompose_forward.1} parent=27 // pred_check_branch
          %466 = sbr.rel (%p464) target = $region36
        $region35: #{decompose_forward.1} parent=27 // pred_region
          _
        $region36: #{decompose_forward.1} parent=27 // pred_fallthru
          _
      $region28: #{decompose_forward.1} parent=5 // pred_fallthru
        _
      %p467 = scmp.le.s32.totalorder 2, %s11
      // Predicated region
      $region37: #{decompose_forward.1} parent=5 // pred_check
        %p468 = pneg %p467
      $region38: #{decompose_forward.1} parent=5 // pred_check_branch
        %470 = sbr.rel (%p468) target = $region40
      $region39: #{decompose_forward.1} parent=5 // pred_region
        %s471 = ssub.s32 %s11, 2
        // Predicated region
        $region41: #{decompose_forward.1} parent=39 // pred_check
          %p472 = pneg %p106
        $region42: #{decompose_forward.1} parent=39 // pred_check_branch
          %474 = sbr.rel (%p472) target = $region44
        $region43: #{decompose_forward.1} parent=39 // pred_region
          %p475 = scmp.lt.s32.totalorder %s22, 0
          %s476 = scalar_select %p475, %s22, 0
          %p477 = scmp.lt.s32.totalorder %s23, 1
          %s478 = scalar_select %p477, %s23, 1
          %s479 = smul.addr %s476, 2
          %s480 = sadd.s32 %s478, %s479
          %s481 = smul.addr %s480, 8
          %s482 = scalar_lea.vmem %s2, %s481
        $region44: #{decompose_forward.1} parent=39 // pred_fallthru
          _
      $region40: #{decompose_forward.1} parent=5 // pred_fallthru
        _
    $region6: #{decompose_forward.1} parent=1 // loop_footer
      %s15 = sadd.s32 1, %s11
    $region7: #{decompose_forward.1} parent=1 // loop_footer_branch
      %10 = sbr.rel target = $region3
    $region8: #{decompose_forward.1} parent=1 // loop_exit
      _
    %483 = vsyncpa [#allocation3], 1
    %s484 = scalar_lea.sflag [#allocation3], 1
    %485 = vsyncpa %s484, 1

</llo_original>
